<compile_context>
chip_gen: v7x
topology: tpu7x:2x2x1
jax: 0.10.0
libtpu: 0.0.40
codegen_flags: <defaults>
</compile_context>

<pallas_src>
import functools
import math

import jax
import jax.numpy as jnp
from jax import lax
from jax.experimental import pallas as pl
from jax.experimental.pallas import tpu as pltpu


def _residual_kernel(x_ref, p_ref, o_ref, *, N, C, H, W, K, pad, eps, inv_count):
    """Fused depthwise-conv + GELU + BatchNorm + residual on a (N*C, H*W) slab.

    x_ref : (N*C, H*W)     f32  rows = (n, c) images, lanes = flattened (h, w)
    p_ref : (N*C, K*K + 3) f32  per-row scalars [K*K conv taps | bias | gamma | beta]
    o_ref : (N*C, H*W)     f32
    """
    NC, HW = x_ref.shape
    KK = K * K

    xv = x_ref[...]            # original input; reused for the residual add
    p = p_ref[...]

    # Lane-index helpers for the 'same' border masks. Row (h) masks are pure
    # flat-index comparisons (no div); column masks need w = col % W.
    col = lax.broadcasted_iota(jnp.int32, (NC, HW), 1)
    if W & (W - 1) == 0:
        w_idx = col & (W - 1)
    else:
        # TODO(synk): non-power-of-two W: pass a precomputed per-lane w-index row
        # instead if the vector integer remainder fails to lower.
        w_idx = col % W

    # ---- depthwise KxK conv ('same', cross-correlation) ---------------------
    # Taps are in-kernel rolls of the single VMEM-resident input (XLU slot),
    # masked at the image borders; the MAC chain is per-row (= per-channel)
    # scalar * slab multiply-adds on the VPU.
    acc = jnp.zeros((NC, HW), jnp.float32)
    for i in range(K):
        dh = i - pad
        for j in range(K):
            dw = j - pad
            off = dh * W + dw                      # source = dest + off (flat index)
            tap = xv if off == 0 else pltpu.roll(xv, shift=(-off) % HW, axis=1)
            conds = []
            if dh < 0:
                conds.append(col >= (-dh) * W)     # h + dh >= 0
            if dh > 0:
                conds.append(col < (H - dh) * W)   # h + dh <  H
            if dw < 0:
                conds.append(w_idx >= -dw)         # w + dw >= 0
            if dw > 0:
                conds.append(w_idx < (W - dw))     # w + dw <  W
            if conds:
                m = conds[0]
                for extra in conds[1:]:
                    m = m & extra
                tap = jnp.where(m, tap, 0.0)
            acc = acc + tap * p[:, i * K + j:i * K + j + 1]
    acc = acc + p[:, KK:KK + 1]                    # conv bias

    # ---- exact GELU (nn.GELU() default): 0.5 * x * (1 + erf(x/sqrt(2))) -----
    # TODO(synk): a tanh-approx GELU would move this off the VALU onto the EUP
    # slot, but it does not match nn.GELU()'s exact erf semantics, so keep erf.
    g = 0.5 * acc * (1.0 + lax.erf(acc * jnp.float32(1.0 / math.sqrt(2.0))))

    # ---- BatchNorm2d, training-mode batch stats, two-pass (safe) variance ---
    # Lane-reduce each row, then cyclically combine the N rows of each channel
    # with sublane rolls (shift by C maps a row onto the next row of the same
    # channel); the per-channel sum lands already broadcast on every row.
    def channel_sum(rows):                          # (NC, 1) -> (NC, 1)
        total = rows
        for n in range(1, N):
            total = total + pltpu.roll(rows, shift=n * C, axis=0)
        return total

    # NOTE: at wide NHW tiles these reduces are worth routing through the idle
    # MXU (jnp.dot(g, ones((HW, 1)))); kept as exact f32 sums here since the
    # reduce is 2 vregs wide and exactness matters for the BN stats.
    s1 = jnp.sum(g, axis=1, keepdims=True)                      # (NC, 1)
    mean = channel_sum(s1) * jnp.float32(inv_count)             # (NC, 1)
    d = g - mean
    s2 = jnp.sum(d * d, axis=1, keepdims=True)                  # (NC, 1)
    var = channel_sum(s2) * jnp.float32(inv_count)              # biased, as BN uses

    gamma = p[:, KK + 1:KK + 2]
    beta = p[:, KK + 2:KK + 3]
    scale = gamma * lax.rsqrt(var + jnp.float32(eps))
    shift = beta - mean * scale

    # ---- fused normalize + residual add -------------------------------------
    o_ref[...] = (g * scale + shift + xv).astype(o_ref.dtype)


def residual_forward(x, conv_w, conv_b, bn_gamma, bn_beta, *, eps=1e-5):
    """x: (N, C, H, W). conv_w: (C, 1, K, K) depthwise weight (groups=C)."""
    N, C, H, W = x.shape
    K = conv_w.shape[-1]
    KK = K * K
    NC, HW = N * C, H * W
    pad = (K - 1) // 2
    # TODO(synk): even K: PyTorch padding='same' pads asymmetrically; only odd K verified.

    # Lane-dense slab: a pure reshape of NCHW (no pad / stack / transpose passes).
    x_slab = x.reshape(NC, HW).astype(jnp.float32)

    # All per-channel scalars expanded per row (row = n*C + c) and packed into a
    # single small input -> one DMA descriptor.
    w_rows = jnp.tile(conv_w.reshape(C, KK).astype(jnp.float32), (N, 1))    # (NC, KK)
    b_rows = jnp.tile(conv_b.astype(jnp.float32), N)[:, None]               # (NC, 1)
    g_rows = jnp.tile(bn_gamma.astype(jnp.float32), N)[:, None]
    be_rows = jnp.tile(bn_beta.astype(jnp.float32), N)[:, None]
    params = jnp.concatenate([w_rows, b_rows, g_rows, be_rows], axis=1)     # (NC, KK+3)

    kernel = functools.partial(
        _residual_kernel, N=N, C=C, H=H, W=W, K=K, pad=pad,
        eps=float(eps), inv_count=1.0 / (N * H * W))

    # Single VMEM-resident block (~20 KiB total); the input is DMA'd once.
    # TODO(synk): for large shapes, tile HW as the last "arbitrary" grid axis with
    # sum/sumsq carried in VMEM scratch (pl.when init/finalize) plus a second
    # normalization pass, and tile rows in whole-channel groups (C_tile % 8 == 0)
    # marked "parallel" (shards across v7x's 2 TensorCores); size tiles against
    # v7x's 64 MiB VMEM via pltpu.CompilerParams(vmem_limit_bytes=...), and use
    # bf16 I/O (f32 in-kernel compute) if the surrounding model is bf16.
    out = pl.pallas_call(
        kernel,
        out_shape=jax.ShapeDtypeStruct((NC, HW), jnp.float32),
        in_specs=[pl.BlockSpec(memory_space=pltpu.MemorySpace.VMEM),
                  pl.BlockSpec(memory_space=pltpu.MemorySpace.VMEM)],
        out_specs=pl.BlockSpec(memory_space=pltpu.MemorySpace.VMEM),
    )(x_slab, params)

    # slab (N*C, H*W) -> NCHW: pure reshape, no transpose pass.
    return out.reshape(N, C, H, W).astype(x.dtype)


def _reference(x, conv_w, conv_b, bn_gamma, bn_beta, eps=1e-5):
    """Pure-JAX reference (correctness check only)."""
    C = x.shape[1]
    out = lax.conv_general_dilated(
        x, conv_w, window_strides=(1, 1), padding="SAME",
        dimension_numbers=("NCHW", "OIHW", "NCHW"), feature_group_count=C)
    out = out + conv_b.reshape(1, C, 1, 1)
    g = 0.5 * out * (1.0 + lax.erf(out / jnp.sqrt(2.0)))
    mean = jnp.mean(g, axis=(0, 2, 3), keepdims=True)
    var = jnp.mean((g - mean) ** 2, axis=(0, 2, 3), keepdims=True)
    bn = bn_gamma.reshape(1, C, 1, 1) * (g - mean) * lax.rsqrt(var + eps) \
        + bn_beta.reshape(1, C, 1, 1)
    return bn + x


if __name__ == "__main__":
    dim, kernel_size = 4, 3
    N, H, W = 2, 16, 16

    key = jax.random.PRNGKey(0)
    kx, kw, kb, kg, kbe = jax.random.split(key, 5)

    x = jax.random.normal(kx, (N, dim, H, W), jnp.float32)
    # nn.Conv2d(dim, dim, k, groups=dim): weight (dim, 1, k, k), bias (dim,)
    conv_w = jax.random.normal(kw, (dim, 1, kernel_size, kernel_size), jnp.float32) * 0.2
    conv_b = jax.random.normal(kb, (dim,), jnp.float32) * 0.1
    # BatchNorm2d affine params (non-trivial so the affine path is exercised)
    bn_gamma = 1.0 + 0.1 * jax.random.normal(kg, (dim,), jnp.float32)
    bn_beta = 0.1 * jax.random.normal(kbe, (dim,), jnp.float32)

    fwd = jax.jit(residual_forward)
    out = jax.block_until_ready(fwd(x, conv_w, conv_b, bn_gamma, bn_beta))

    ref = _reference(x, conv_w, conv_b, bn_gamma, bn_beta)
    assert out.shape == (N, dim, H, W) and out.dtype == jnp.float32
    assert jnp.allclose(out, ref, atol=1e-4, rtol=1e-4), \
        float(jnp.max(jnp.abs(out - ref)))

    print("KERNEL_OK")
</pallas_src>

<mosaic_0001>
module attributes {stable_mosaic.version = 11 : i64} {
  func.func @_residual_kernel(%arg0: memref<8x256xf32, #tpu.memory_space<vmem>>, %arg1: memref<8x12xf32, #tpu.memory_space<vmem>>, %arg2: memref<8x256xf32, #tpu.memory_space<vmem>>) attributes {dimension_semantics = [], scalar_prefetch = 0 : i64, scratch_operands = 0 : i64, tpu.core_type = #tpu.core_type<tc>} {
    %c0 = arith.constant 0 : index
    %c0_0 = arith.constant 0 : index
    %0 = vector.load %arg0[%c0, %c0_0] : memref<8x256xf32, #tpu.memory_space<vmem>>, vector<8x256xf32>
    %c0_1 = arith.constant 0 : index
    %c0_2 = arith.constant 0 : index
    %1 = vector.load %arg1[%c0_1, %c0_2] : memref<8x12xf32, #tpu.memory_space<vmem>>, vector<8x12xf32>
    %2 = tpu.iota {dimensions = array<i32: 1>} : vector<8x256xi32>
    %c15_i32 = arith.constant 15 : i32
    %3 = vector.broadcast %c15_i32 : i32 to vector<8x256xi32>
    %4 = arith.andi %2, %3 : vector<8x256xi32>
    %cst = arith.constant 0.000000e+00 : f32
    %5 = vector.broadcast %cst : f32 to vector<8x256xf32>
    %c17_i32 = arith.constant 17 : i32
    %6 = tpu.dynamic_rotate %0 by %c17_i32 dim 1 : vector<8x256xf32>, i32 -> vector<8x256xf32>
    %c16_i32 = arith.constant 16 : i32
    %7 = vector.broadcast %c16_i32 : i32 to vector<8x256xi32>
    %8 = arith.cmpi sge, %2, %7 : vector<8x256xi32>
    %c1_i32 = arith.constant 1 : i32
    %9 = vector.broadcast %c1_i32 : i32 to vector<8x256xi32>
    %10 = arith.cmpi sge, %4, %9 : vector<8x256xi32>
    %11 = arith.andi %8, %10 : vector<8x256xi1>
    %cst_3 = arith.constant 0.000000e+00 : f32
    %12 = vector.broadcast %cst_3 : f32 to vector<8x256xf32>
    %13 = arith.select %11, %6, %12 : vector<8x256xi1>, vector<8x256xf32>
    %14 = vector.extract_strided_slice %1 {offsets = [0, 0], sizes = [8, 1], strides = [1, 1]} : vector<8x12xf32> to vector<8x1xf32>
    %15 = vector.broadcast %14 : vector<8x1xf32> to vector<8x256xf32>
    %16 = arith.mulf %13, %15 : vector<8x256xf32>
    %17 = arith.addf %5, %16 : vector<8x256xf32>
    %c16_i32_4 = arith.constant 16 : i32
    %18 = tpu.dynamic_rotate %0 by %c16_i32_4 dim 1 : vector<8x256xf32>, i32 -> vector<8x256xf32>
    %c16_i32_5 = arith.constant 16 : i32
    %19 = vector.broadcast %c16_i32_5 : i32 to vector<8x256xi32>
    %20 = arith.cmpi sge, %2, %19 : vector<8x256xi32>
    %cst_6 = arith.constant 0.000000e+00 : f32
    %21 = vector.broadcast %cst_6 : f32 to vector<8x256xf32>
    %22 = arith.select %20, %18, %21 : vector<8x256xi1>, vector<8x256xf32>
    %23 = vector.extract_strided_slice %1 {offsets = [0, 1], sizes = [8, 1], strides = [1, 1]} : vector<8x12xf32> to vector<8x1xf32>
    %24 = vector.broadcast %23 : vector<8x1xf32> to vector<8x256xf32>
    %25 = arith.mulf %22, %24 : vector<8x256xf32>
    %26 = arith.addf %17, %25 : vector<8x256xf32>
    %c15_i32_7 = arith.constant 15 : i32
    %27 = tpu.dynamic_rotate %0 by %c15_i32_7 dim 1 : vector<8x256xf32>, i32 -> vector<8x256xf32>
    %c16_i32_8 = arith.constant 16 : i32
    %28 = vector.broadcast %c16_i32_8 : i32 to vector<8x256xi32>
    %29 = arith.cmpi sge, %2, %28 : vector<8x256xi32>
    %c15_i32_9 = arith.constant 15 : i32
    %30 = vector.broadcast %c15_i32_9 : i32 to vector<8x256xi32>
    %31 = arith.cmpi slt, %4, %30 : vector<8x256xi32>
    %32 = arith.andi %29, %31 : vector<8x256xi1>
    %cst_10 = arith.constant 0.000000e+00 : f32
    %33 = vector.broadcast %cst_10 : f32 to vector<8x256xf32>
    %34 = arith.select %32, %27, %33 : vector<8x256xi1>, vector<8x256xf32>
    %35 = vector.extract_strided_slice %1 {offsets = [0, 2], sizes = [8, 1], strides = [1, 1]} : vector<8x12xf32> to vector<8x1xf32>
    %36 = vector.broadcast %35 : vector<8x1xf32> to vector<8x256xf32>
    %37 = arith.mulf %34, %36 : vector<8x256xf32>
    %38 = arith.addf %26, %37 : vector<8x256xf32>
    %c1_i32_11 = arith.constant 1 : i32
    %39 = tpu.dynamic_rotate %0 by %c1_i32_11 dim 1 : vector<8x256xf32>, i32 -> vector<8x256xf32>
    %c1_i32_12 = arith.constant 1 : i32
    %40 = vector.broadcast %c1_i32_12 : i32 to vector<8x256xi32>
    %41 = arith.cmpi sge, %4, %40 : vector<8x256xi32>
    %cst_13 = arith.constant 0.000000e+00 : f32
    %42 = vector.broadcast %cst_13 : f32 to vector<8x256xf32>
    %43 = arith.select %41, %39, %42 : vector<8x256xi1>, vector<8x256xf32>
    %44 = vector.extract_strided_slice %1 {offsets = [0, 3], sizes = [8, 1], strides = [1, 1]} : vector<8x12xf32> to vector<8x1xf32>
    %45 = vector.broadcast %44 : vector<8x1xf32> to vector<8x256xf32>
    %46 = arith.mulf %43, %45 : vector<8x256xf32>
    %47 = arith.addf %38, %46 : vector<8x256xf32>
    %48 = vector.extract_strided_slice %1 {offsets = [0, 4], sizes = [8, 1], strides = [1, 1]} : vector<8x12xf32> to vector<8x1xf32>
    %49 = vector.broadcast %48 : vector<8x1xf32> to vector<8x256xf32>
    %50 = arith.mulf %0, %49 : vector<8x256xf32>
    %51 = arith.addf %47, %50 : vector<8x256xf32>
    %c255_i32 = arith.constant 255 : i32
    %52 = tpu.dynamic_rotate %0 by %c255_i32 dim 1 : vector<8x256xf32>, i32 -> vector<8x256xf32>
    %c15_i32_14 = arith.constant 15 : i32
    %53 = vector.broadcast %c15_i32_14 : i32 to vector<8x256xi32>
    %54 = arith.cmpi slt, %4, %53 : vector<8x256xi32>
    %cst_15 = arith.constant 0.000000e+00 : f32
    %55 = vector.broadcast %cst_15 : f32 to vector<8x256xf32>
    %56 = arith.select %54, %52, %55 : vector<8x256xi1>, vector<8x256xf32>
    %57 = vector.extract_strided_slice %1 {offsets = [0, 5], sizes = [8, 1], strides = [1, 1]} : vector<8x12xf32> to vector<8x1xf32>
    %58 = vector.broadcast %57 : vector<8x1xf32> to vector<8x256xf32>
    %59 = arith.mulf %56, %58 : vector<8x256xf32>
    %60 = arith.addf %51, %59 : vector<8x256xf32>
    %c241_i32 = arith.constant 241 : i32
    %61 = tpu.dynamic_rotate %0 by %c241_i32 dim 1 : vector<8x256xf32>, i32 -> vector<8x256xf32>
    %c240_i32 = arith.constant 240 : i32
    %62 = vector.broadcast %c240_i32 : i32 to vector<8x256xi32>
    %63 = arith.cmpi slt, %2, %62 : vector<8x256xi32>
    %c1_i32_16 = arith.constant 1 : i32
    %64 = vector.broadcast %c1_i32_16 : i32 to vector<8x256xi32>
    %65 = arith.cmpi sge, %4, %64 : vector<8x256xi32>
    %66 = arith.andi %63, %65 : vector<8x256xi1>
    %cst_17 = arith.constant 0.000000e+00 : f32
    %67 = vector.broadcast %cst_17 : f32 to vector<8x256xf32>
    %68 = arith.select %66, %61, %67 : vector<8x256xi1>, vector<8x256xf32>
    %69 = vector.extract_strided_slice %1 {offsets = [0, 6], sizes = [8, 1], strides = [1, 1]} : vector<8x12xf32> to vector<8x1xf32>
    %70 = vector.broadcast %69 : vector<8x1xf32> to vector<8x256xf32>
    %71 = arith.mulf %68, %70 : vector<8x256xf32>
    %72 = arith.addf %60, %71 : vector<8x256xf32>
    %c240_i32_18 = arith.constant 240 : i32
    %73 = tpu.dynamic_rotate %0 by %c240_i32_18 dim 1 : vector<8x256xf32>, i32 -> vector<8x256xf32>
    %c240_i32_19 = arith.constant 240 : i32
    %74 = vector.broadcast %c240_i32_19 : i32 to vector<8x256xi32>
    %75 = arith.cmpi slt, %2, %74 : vector<8x256xi32>
    %cst_20 = arith.constant 0.000000e+00 : f32
    %76 = vector.broadcast %cst_20 : f32 to vector<8x256xf32>
    %77 = arith.select %75, %73, %76 : vector<8x256xi1>, vector<8x256xf32>
    %78 = vector.extract_strided_slice %1 {offsets = [0, 7], sizes = [8, 1], strides = [1, 1]} : vector<8x12xf32> to vector<8x1xf32>
    %79 = vector.broadcast %78 : vector<8x1xf32> to vector<8x256xf32>
    %80 = arith.mulf %77, %79 : vector<8x256xf32>
    %81 = arith.addf %72, %80 : vector<8x256xf32>
    %c239_i32 = arith.constant 239 : i32
    %82 = tpu.dynamic_rotate %0 by %c239_i32 dim 1 : vector<8x256xf32>, i32 -> vector<8x256xf32>
    %c240_i32_21 = arith.constant 240 : i32
    %83 = vector.broadcast %c240_i32_21 : i32 to vector<8x256xi32>
    %84 = arith.cmpi slt, %2, %83 : vector<8x256xi32>
    %c15_i32_22 = arith.constant 15 : i32
    %85 = vector.broadcast %c15_i32_22 : i32 to vector<8x256xi32>
    %86 = arith.cmpi slt, %4, %85 : vector<8x256xi32>
    %87 = arith.andi %84, %86 : vector<8x256xi1>
    %cst_23 = arith.constant 0.000000e+00 : f32
    %88 = vector.broadcast %cst_23 : f32 to vector<8x256xf32>
    %89 = arith.select %87, %82, %88 : vector<8x256xi1>, vector<8x256xf32>
    %90 = vector.extract_strided_slice %1 {offsets = [0, 8], sizes = [8, 1], strides = [1, 1]} : vector<8x12xf32> to vector<8x1xf32>
    %91 = vector.broadcast %90 : vector<8x1xf32> to vector<8x256xf32>
    %92 = arith.mulf %89, %91 : vector<8x256xf32>
    %93 = arith.addf %81, %92 : vector<8x256xf32>
    %94 = vector.extract_strided_slice %1 {offsets = [0, 9], sizes = [8, 1], strides = [1, 1]} : vector<8x12xf32> to vector<8x1xf32>
    %95 = vector.broadcast %94 : vector<8x1xf32> to vector<8x256xf32>
    %96 = arith.addf %93, %95 : vector<8x256xf32>
    %cst_24 = arith.constant 5.000000e-01 : f32
    %97 = vector.broadcast %cst_24 : f32 to vector<8x256xf32>
    %98 = arith.mulf %97, %96 : vector<8x256xf32>
    %cst_25 = arith.constant 0.707106769 : f32
    %99 = vector.broadcast %cst_25 : f32 to vector<8x256xf32>
    %100 = arith.mulf %96, %99 : vector<8x256xf32>
    %101 = math.erf %100 : vector<8x256xf32>
    %cst_26 = arith.constant 1.000000e+00 : f32
    %102 = vector.broadcast %cst_26 : f32 to vector<8x256xf32>
    %103 = arith.addf %102, %101 : vector<8x256xf32>
    %104 = arith.mulf %98, %103 : vector<8x256xf32>
    %cst_27 = arith.constant dense<0.000000e+00> : vector<8xf32>
    %105 = vector.multi_reduction <add>, %104, %cst_27 [1] : vector<8x256xf32> to vector<8xf32>
    %106 = vector.shape_cast %105 : vector<8xf32> to vector<8x1xf32>
    %c4_i32 = arith.constant 4 : i32
    %107 = tpu.dynamic_rotate %106 by %c4_i32 dim 0 : vector<8x1xf32>, i32 -> vector<8x1xf32>
    %108 = arith.addf %106, %107 : vector<8x1xf32>
    %cst_28 = arith.constant 0.001953125 : f32
    %109 = vector.broadcast %cst_28 : f32 to vector<8x1xf32>
    %110 = arith.mulf %108, %109 : vector<8x1xf32>
    %111 = vector.broadcast %110 : vector<8x1xf32> to vector<8x256xf32>
    %112 = arith.subf %104, %111 : vector<8x256xf32>
    %113 = arith.mulf %112, %112 : vector<8x256xf32>
    %cst_29 = arith.constant dense<0.000000e+00> : vector<8xf32>
    %114 = vector.multi_reduction <add>, %113, %cst_29 [1] : vector<8x256xf32> to vector<8xf32>
    %115 = vector.shape_cast %114 : vector<8xf32> to vector<8x1xf32>
    %c4_i32_30 = arith.constant 4 : i32
    %116 = tpu.dynamic_rotate %115 by %c4_i32_30 dim 0 : vector<8x1xf32>, i32 -> vector<8x1xf32>
    %117 = arith.addf %115, %116 : vector<8x1xf32>
    %cst_31 = arith.constant 0.001953125 : f32
    %118 = vector.broadcast %cst_31 : f32 to vector<8x1xf32>
    %119 = arith.mulf %117, %118 : vector<8x1xf32>
    %120 = vector.extract_strided_slice %1 {offsets = [0, 10], sizes = [8, 1], strides = [1, 1]} : vector<8x12xf32> to vector<8x1xf32>
    %121 = vector.extract_strided_slice %1 {offsets = [0, 11], sizes = [8, 1], strides = [1, 1]} : vector<8x12xf32> to vector<8x1xf32>
    %cst_32 = arith.constant 9.99999974E-6 : f32
    %122 = vector.broadcast %cst_32 : f32 to vector<8x1xf32>
    %123 = arith.addf %119, %122 : vector<8x1xf32>
    %124 = math.rsqrt %123 : vector<8x1xf32>
    %125 = arith.mulf %120, %124 : vector<8x1xf32>
    %126 = arith.mulf %110, %125 : vector<8x1xf32>
    %127 = arith.subf %121, %126 : vector<8x1xf32>
    %128 = vector.broadcast %125 : vector<8x1xf32> to vector<8x256xf32>
    %129 = arith.mulf %104, %128 : vector<8x256xf32>
    %130 = vector.broadcast %127 : vector<8x1xf32> to vector<8x256xf32>
    %131 = arith.addf %129, %130 : vector<8x256xf32>
    %132 = arith.addf %131, %0 : vector<8x256xf32>
    %c0_33 = arith.constant 0 : index
    %c0_34 = arith.constant 0 : index
    %133 = vector.load %arg2[%c0_33, %c0_34] : memref<8x256xf32, #tpu.memory_space<vmem>>, vector<8x256xf32>
    tpu.vector_store %arg2[%c0_33, %c0_34], %132 {strides = array<i32>} : memref<8x256xf32, #tpu.memory_space<vmem>>, vector<8x256xf32>,
    return
  }
}

</mosaic_0001>

<llo_original>
// kernel: tile.26
$region0: #{tile.26}
  #allocation0 [shape = 's32[1]{0}', space=sflag, size = 0x4, scoped, tag = 'scoped memory for tile.26']
  %s0 = inlined_call_operand.vmem [shape: f32[4], index: 0, kind: input, shape index: {}]
  %s1 = inlined_call_operand.vmem [shape: f32[2,4], index: 1, kind: output, shape index: {}]
  // Predicated region
  $region2: #{tile.26} parent=0 // pred_check
    _
  $region3: #{tile.26} parent=0 // pred_check_branch
    %3 = sbr.rel (0) target = $region5
  $region4: #{tile.26} parent=0 // pred_region
    _
  $region5: #{tile.26} parent=0 // pred_fallthru
    _
  %v4 = vld [vmem:[%s0] ss:$0 sm:$0xff]
  %5 = vst [vmem:[%s1] sm:$0x3] %v4

// kernel: tile.2
$region0: #{tile.2}
  %s0 = inlined_call_operand.vmem [shape: f32[2,4], index: 0, kind: input, shape index: {}]
  %s1 = inlined_call_operand.vmem [shape: f32[8,1], index: 1, kind: output, shape index: {}]
  $region1: #{tile.2} parent=0
    #allocation0 [shape = 'u8[4096]{0}', space=vmem, size = 0x1000, scoped, tag = 'scoped mem for input reshape']
    %s3 = sshllo.u32 0, 2
    %v4 = vld [vmem:[%s0] sm:%s3]
    %5 = vst [vmem:[#allocation0] sm:%s3] %v4
    %v6 = vld [vmem:[#allocation0] sm:$0x3]
    %vm7 = vcmask 7168
    %8 = vst.msk [vmem:[%s1] ss:$4 sm:$0x3] %vm7, %v6
    %v9 = vld [vmem:[#allocation0] sm:$0x3]
    %10 = vrot.lane.b32.xlu0 %v9, 127
    %v11 = vpop.permute.xlu0 %10
    %vm12 = vcmask 7168
    %s13 = scalar_lea.vmem %s1, 1
    %14 = vst.msk [vmem:[%s13] ss:$4 sm:$0x3] %vm12, %v11
    %v15 = vld [vmem:[#allocation0] sm:$0x3]
    %16 = vrot.lane.b32.xlu0 %v15, 126
    %v17 = vpop.permute.xlu0 %16
    %vm18 = vcmask 7168
    %s19 = scalar_lea.vmem %s1, 2
    %20 = vst.msk [vmem:[%s19] ss:$4 sm:$0x3] %vm18, %v17
    %v21 = vld [vmem:[#allocation0] sm:$0x3]
    %22 = vrot.lane.b32.xlu0 %v21, 125
    %v23 = vpop.permute.xlu0 %22
    %vm24 = vcmask 7168
    %s25 = scalar_lea.vmem %s1, 3
    %26 = vst.msk [vmem:[%s25] ss:$4 sm:$0x3] %vm24, %v23

// kernel: residual_forward.1
$region0: #{residual_forward.1}
  #allocation0 [shape = 'u32[]', space=smem, size = 0x4, offset = 0x4, fixed_abs, tag = 'smem constant byte address 0x4 - core index']
  #allocation1 [shape = 'u32[144,128]{1,0:T(1,128)}', space=vmem, size = 0x12000, scoped, tag = 'internal scratch']
  %s0 = inlined_call_operand.vmem [shape: f32[8,256], index: 0, kind: input, shape index: {}]
  %s1 = inlined_call_operand.vmem [shape: f32[8,12], index: 1, kind: input, shape index: {}]
  %s2 = inlined_call_operand.vmem [shape: f32[8,256], index: 2, kind: output, shape index: {}]
  %s3 = sld [smem:[#allocation0]]
  $region18: #{residual_forward.1} parent=0
    _
  %s5 = ssub.s32 1, %s3
  %s6 = scalar_select 0, %s5, %s3
  // Predicated region
  $region2: #{residual_forward.1} parent=0 // pred_check
    _
  $region3: #{residual_forward.1} parent=0 // pred_check_branch
    %8 = sbr.rel (0) target = $region5
  $region4: #{residual_forward.1} parent=0 // pred_region
    _
  $region5: #{residual_forward.1} parent=0 // pred_fallthru
    _
  // Predicated region
  $region6: #{residual_forward.1} parent=0 // pred_check
    _
  $region7: #{residual_forward.1} parent=0 // pred_check_branch
    %10 = sbr.rel (0) target = $region9
  $region8: #{residual_forward.1} parent=0 // pred_region
    _
  $region9: #{residual_forward.1} parent=0 // pred_fallthru
    _
  %v11 = vld [vmem:[%s0] sm:$0xff]
  %v12 = vld [vmem:[%s0 + $0x8] sm:$0xff]
  %v13 = vld [vmem:[%s1] sm:$0xff]
  %v14 = vlaneseq
  %v15 = vand.u32 %v14, 127
  %v16 = vadd.s32 %v15, 128
  %v17 = vand.u32 %v15, 15
  %v18 = vand.u32 %v16, 15
  %19 = vrot.lane.b32.xlu0 %v11, 17
  %v20 = vpop.permute.xlu0 %19
  %21 = vrot.lane.b32.xlu0 %v12, 17
  %v22 = vpop.permute.xlu0 %21
  %vm23 = vcmp.lt.s32.totalorder %v15, 17
  %v24 = vsel %vm23, %v20, %v22
  %v25 = vsel %vm23, %v22, %v20
  %vm26 = vcmp.ge.s32.totalorder %v15, 16
  %vm27 = vcmp.ge.s32.totalorder %v16, 16
  %vm28 = vcmp.ge.s32.totalorder %v17, 1
  %vm29 = vcmp.ge.s32.totalorder %v18, 1
  %vm30 = vmand %vm26, %vm28
  %vm31 = vmand %vm27, %vm29
  %v32 = vsel %vm30, %v25, 0.0
  %v33 = vsel %vm31, %v24, 0.0
  %35 = vset.pattern.permute.xlu0 0
  %36 = vperm.xlu0 %35, %v13
  %v37 = vpop.permute.xlu0 %36
  %v39 = vmul.f32 %v32, %v37
  %v40 = vmul.f32 %v33, %v37
  %v41 = vadd.f32 %v39, 0.0
  %v42 = vadd.f32 %v40, 0.0
  %43 = vrot.lane.b32.xlu0 %v11, 16
  %v44 = vpop.permute.xlu0 %43
  %45 = vrot.lane.b32.xlu0 %v12, 16
  %v46 = vpop.permute.xlu0 %45
  %vm47 = vcmp.lt.s32.totalorder %v15, 16
  %v48 = vsel %vm47, %v44, %v46
  %v49 = vsel %vm47, %v46, %v44
  %v50 = vsel %vm26, %v49, 0.0
  %v51 = vsel %vm27, %v48, 0.0
  %52 = vset.pattern.permute.xlu0 1
  %53 = vperm.xlu0 %52, %v13
  %v54 = vpop.permute.xlu0 %53
  %v56 = vmul.f32 %v50, %v54
  %v57 = vmul.f32 %v51, %v54
  %v58 = vadd.f32 %v41, %v56
  %v59 = vadd.f32 %v42, %v57
  %60 = vrot.lane.b32.xlu0 %v11, 15
  %v61 = vpop.permute.xlu0 %60
  %62 = vrot.lane.b32.xlu0 %v12, 15
  %v63 = vpop.permute.xlu0 %62
  %vm64 = vcmp.lt.s32.totalorder %v15, 15
  %v65 = vsel %vm64, %v61, %v63
  %v66 = vsel %vm64, %v63, %v61
  %vm67 = vcmp.lt.s32.totalorder %v17, 15
  %vm68 = vcmp.lt.s32.totalorder %v18, 15
  %vm69 = vmand %vm26, %vm67
  %vm70 = vmand %vm27, %vm68
  %v71 = vsel %vm69, %v66, 0.0
  %v72 = vsel %vm70, %v65, 0.0
  %73 = vset.pattern.permute.xlu0 2
  %74 = vperm.xlu0 %73, %v13
  %v75 = vpop.permute.xlu0 %74
  %v77 = vmul.f32 %v71, %v75
  %v78 = vmul.f32 %v72, %v75
  %v79 = vadd.f32 %v58, %v77
  %v80 = vadd.f32 %v59, %v78
  %81 = vrot.lane.b32.xlu0 %v11, 1
  %v82 = vpop.permute.xlu0 %81
  %83 = vrot.lane.b32.xlu0 %v12, 1
  %v84 = vpop.permute.xlu0 %83
  %vm85 = vcmp.lt.s32.totalorder %v15, 1
  %v86 = vsel %vm85, %v82, %v84
  %v87 = vsel %vm85, %v84, %v82
  %v88 = vsel %vm28, %v87, 0.0
  %v89 = vsel %vm29, %v86, 0.0
  %90 = vset.pattern.permute.xlu0 3
  %91 = vperm.xlu0 %90, %v13
  %v92 = vpop.permute.xlu0 %91
  %v94 = vmul.f32 %v88, %v92
  %v95 = vmul.f32 %v89, %v92
  %v96 = vadd.f32 %v79, %v94
  %v97 = vadd.f32 %v80, %v95
  %98 = vset.pattern.permute.xlu0 4
  %99 = vperm.xlu0 %98, %v13
  %v100 = vpop.permute.xlu0 %99
  %v102 = vmul.f32 %v11, %v100
  %v103 = vmul.f32 %v12, %v100
  %v104 = vadd.f32 %v96, %v102
  %v105 = vadd.f32 %v97, %v103
  %106 = vrot.lane.b32.xlu0 %v11, 127
  %v107 = vpop.permute.xlu0 %106
  %108 = vrot.lane.b32.xlu0 %v12, 127
  %v109 = vpop.permute.xlu0 %108
  %vm110 = vcmp.lt.s32.totalorder %v15, 127
  %v111 = vsel %vm110, %v107, %v109
  %v112 = vsel %vm110, %v109, %v107
  %v113 = vsel %vm67, %v111, 0.0
  %v114 = vsel %vm68, %v112, 0.0
  %115 = vset.pattern.permute.xlu0 5
  %116 = vperm.xlu0 %115, %v13
  %v117 = vpop.permute.xlu0 %116
  %v119 = vmul.f32 %v113, %v117
  %v120 = vmul.f32 %v114, %v117
  %v121 = vadd.f32 %v104, %v119
  %v122 = vadd.f32 %v105, %v120
  %123 = vrot.lane.b32.xlu0 %v11, 113
  %v124 = vpop.permute.xlu0 %123
  %125 = vrot.lane.b32.xlu0 %v12, 113
  %v126 = vpop.permute.xlu0 %125
  %vm127 = vcmp.lt.s32.totalorder %v15, 113
  %v128 = vsel %vm127, %v124, %v126
  %v129 = vsel %vm127, %v126, %v124
  %vm130 = vcmp.lt.s32.totalorder %v15, 240
  %vm131 = vcmp.lt.s32.totalorder %v16, 240
  %vm132 = vmand %vm130, %vm28
  %vm133 = vmand %vm131, %vm29
  %v134 = vsel %vm132, %v128, 0.0
  %v135 = vsel %vm133, %v129, 0.0
  %136 = vset.pattern.permute.xlu0 6
  %137 = vperm.xlu0 %136, %v13
  %v138 = vpop.permute.xlu0 %137
  %v140 = vmul.f32 %v134, %v138
  %v141 = vmul.f32 %v135, %v138
  %v142 = vadd.f32 %v121, %v140
  %v143 = vadd.f32 %v122, %v141
  %144 = vrot.lane.b32.xlu0 %v11, 112
  %v145 = vpop.permute.xlu0 %144
  %146 = vrot.lane.b32.xlu0 %v12, 112
  %v147 = vpop.permute.xlu0 %146
  %vm148 = vcmp.lt.s32.totalorder %v15, 112
  %v149 = vsel %vm148, %v145, %v147
  %v150 = vsel %vm148, %v147, %v145
  %v151 = vsel %vm130, %v149, 0.0
  %v152 = vsel %vm131, %v150, 0.0
  %153 = vset.pattern.permute.xlu0 7
  %154 = vperm.xlu0 %153, %v13
  %v155 = vpop.permute.xlu0 %154
  %v157 = vmul.f32 %v151, %v155
  %v158 = vmul.f32 %v152, %v155
  %v159 = vadd.f32 %v142, %v157
  %v160 = vadd.f32 %v143, %v158
  %161 = vrot.lane.b32.xlu0 %v11, 111
  %v162 = vpop.permute.xlu0 %161
  %163 = vrot.lane.b32.xlu0 %v12, 111
  %v164 = vpop.permute.xlu0 %163
  %vm165 = vcmp.lt.s32.totalorder %v15, 111
  %v166 = vsel %vm165, %v162, %v164
  %v167 = vsel %vm165, %v164, %v162
  %vm168 = vmand %vm130, %vm67
  %vm169 = vmand %vm131, %vm68
  %v170 = vsel %vm168, %v166, 0.0
  %v171 = vsel %vm169, %v167, 0.0
  %172 = vset.pattern.permute.xlu0 8
  %173 = vperm.xlu0 %172, %v13
  %v174 = vpop.permute.xlu0 %173
  %v176 = vmul.f32 %v170, %v174
  %v177 = vmul.f32 %v171, %v174
  %v178 = vadd.f32 %v159, %v176
  %v179 = vadd.f32 %v160, %v177
  %180 = vset.pattern.permute.xlu0 9
  %181 = vperm.xlu0 %180, %v13
  %v182 = vpop.permute.xlu0 %181
  %v184 = vadd.f32 %v178, %v182
  %v185 = vadd.f32 %v179, %v182
  %v186 = vmul.f32 %v184, 0.5
  %v187 = vmul.f32 %v185, 0.5
  %v188 = vmul.f32 %v184, 0.70710677
  %v189 = vmul.f32 %v185, 0.70710677
  %v190 = verf.f32.pop %v188
  %v191 = verf.f32.pop %v189
  %v192 = vadd.f32 %v190, 1.0
  %v193 = vadd.f32 %v191, 1.0
  %v194 = vmul.f32 %v186, %v192
  %v195 = vmul.f32 %v187, %v193
  %v196 = vadd.f32 %v194, %v195
  %197 = vadd.xlane.f32.xlu0 %v196
  %v198 = vpop.xlane.xlu0 %197
  %v199 = vrot.slane %v198, 4
  %v200 = vadd.f32 %v198, %v199
  %v201 = vmul.f32 %v200, 0.001953125
  %203 = vset.pattern.permute.xlu0 0
  %204 = vperm.xlu0 %203, %v201
  %v205 = vpop.permute.xlu0 %204
  %v207 = vsub.f32 %v194, %v205
  %v208 = vsub.f32 %v195, %v205
  %v209 = vmul.f32 %v207, %v207
  %v210 = vmul.f32 %v208, %v208
  %v211 = vadd.f32 %v209, %v210
  %212 = vadd.xlane.f32.xlu0 %v211
  %v213 = vpop.xlane.xlu0 %212
  %v214 = vrot.slane %v213, 4
  %v215 = vadd.f32 %v213, %v214
  %v216 = vmul.f32 %v215, 0.001953125
  %v217 = vadd.f32 %v216, 1e-05
  %v218 = vrsqrt.pop %v217
  %220 = vrot.lane.b32.xlu0 %v218, 10
  %v221 = vpop.permute.xlu0 %220
  %v223 = vmul.f32 %v13, %v221
  %225 = vrot.lane.b32.xlu0 %v223, 118
  %v226 = vpop.permute.xlu0 %225
  %v228 = vmul.f32 %v201, %v226
  %230 = vrot.lane.b32.xlu0 %v228, 11
  %v231 = vpop.permute.xlu0 %230
  %v233 = vsub.f32 %v13, %v231
  %234 = vset.pattern.permute.xlu0 10
  %235 = vperm.xlu0 %234, %v223
  %v236 = vpop.permute.xlu0 %235
  %v238 = vmul.f32 %v194, %v236
  %v239 = vmul.f32 %v195, %v236
  %241 = vset.pattern.permute.xlu0 11
  %242 = vperm.xlu0 %241, %v233
  %v243 = vpop.permute.xlu0 %242
  %v245 = vadd.f32 %v238, %v243
  %v246 = vadd.f32 %v239, %v243
  %v247 = vadd.f32 %v245, %v11
  %v248 = vadd.f32 %v246, %v12
  %249 = vst [vmem:[%s2] sm:$0xff] %v247
  %250 = vst [vmem:[%s2 + $0x8] sm:$0xff] %v248
  // Predicated region
  $region10: #{residual_forward.1} parent=0 // pred_check
    _
  $region11: #{residual_forward.1} parent=0 // pred_check_branch
    %252 = sbr.rel (0) target = $region13
  $region12: #{residual_forward.1} parent=0 // pred_region
    _
  $region13: #{residual_forward.1} parent=0 // pred_fallthru
    _
  // Predicated region
  $region14: #{residual_forward.1} parent=0 // pred_check
    _
  $region15: #{residual_forward.1} parent=0 // pred_check_branch
    %254 = sbr.rel (0) target = $region17
  $region16: #{residual_forward.1} parent=0 // pred_region
    _
  $region17: #{residual_forward.1} parent=0 // pred_fallthru
    _

</llo_original>
